<compile_context>
chip_gen: v6e
topology: v6e:2x2x1
jax: 0.10.0
libtpu: 0.0.40
codegen_flags: <defaults>
</compile_context>

<pallas_src>
import numpy as np
import jax
import jax.numpy as jnp
from jax.experimental import pallas as pl
from jax.experimental.pallas import tpu as pltpu


def temporal_attention_kernel(x_ref, w12_ref, w3_ref, be_ref, vet_ref, out_ref):
    bt, t, k = x_ref.shape            # static block shape
    v = w12_ref.shape[1]

    # Flatten the batch block into the matmul M dimension (bt*T rows).
    x2d = x_ref[...].reshape(bt * t, k).astype(jnp.float32)      # (bt*T, K)

    # lhs[b,t,v'] = sum_{v,f} x[b,t,v,f] * U1[v] * U2[f,v']   (shared-weight MXU, K=V*F)
    lhs = jnp.dot(x2d, w12_ref[...],
                  preferred_element_type=jnp.float32).reshape(bt, t, v)
    # rhs[b,t,u]  = sum_f  x[b,t,u,f] * U3[f]                  (same LHS, delta-weight)
    rhs = jnp.dot(x2d, w3_ref[...],
                  preferred_element_type=jnp.float32).reshape(bt, t, v)

    # product[b,i,j] = sum_v lhs[b,i,v] * rhs[b,j,v]
    if t >= 64:
        # large T: genuinely batched, use the MXU
        product = jnp.einsum('biv,bjv->bij', lhs, rhs,
                             preferred_element_type=jnp.float32)
    else:
        # tiny T: a <1%-utilized MXU round trip per batch is pure push/drain
        # latency -- use the otherwise-idle VPU (mul) + XLU (lane reduce).
        product = jnp.sum(lhs[:, :, None, :] * rhs[:, None, :, :], axis=-1)

    sig = jax.nn.sigmoid(product + be_ref[...])                  # (bt, T, T)

    # s[b,t,i] = sum_k v_e[i,k] * sig[b,t,k]  ==  sig_2d @ v_e^T (pre-transposed)
    s = jnp.dot(sig.reshape(bt * t, t), vet_ref[...],
                preferred_element_type=jnp.float32).reshape(bt, t, t)

    # softmax over the timestep axis (dim=1 of the (B, T, T) output)
    s = s - jnp.max(s, axis=1, keepdims=True)
    e = jnp.exp(s)
    denom = jnp.sum(e, axis=1, keepdims=True)
    out_ref[...] = (e * pl.reciprocal(denom, approx=False)).astype(out_ref.dtype)


def _round_up(n, m):
    return ((n + m - 1) // m) * m


_VMEM_LIMIT_BYTES = 32 * 1024 * 1024   # <= physical per-TC VMEM on v5e/v6e/v7x


def _pick_block_batch(B, T, V, F):
    """Batch-block size from a padded, double-buffer-aware VMEM footprint.

    Counts the 2x-buffered x and output blocks, the matmul/softmax
    temporaries (each padded to (8, 128) vreg tiles), and the fixed weight
    slabs; budgets against half of the explicit scoped limit.  On v7x the
    grid is the only cross-TensorCore sharding mechanism here, so bt is
    capped to keep >= 2 parallel grid steps whenever B > 1.
    """
    K = V * F
    f32 = 4
    x_blk = _round_up(T, 8) * _round_up(K, 128) * f32          # x slab per batch
    tv_blk = _round_up(T, 8) * _round_up(V, 128) * f32          # lhs / rhs slabs
    tt_blk = _round_up(T, 8) * _round_up(T, 128) * f32          # each (T, T) temp
    bcast = T * _round_up(T, 8) * _round_up(V, 128) * f32       # (T, T, V) outer-product temp
    per_batch = (2 * x_blk           # double-buffered input block
                 + 2 * tt_blk        # double-buffered output block
                 + 2 * tv_blk        # lhs, rhs
                 + 6 * tt_blk        # product / sig / s / max / exp / denom
                 + bcast)
    fixed = 2 * (2 * _round_up(K, 8) * _round_up(V, 128) * f32  # W12, W3 (buffered)
                 + 2 * _round_up(T, 8) * _round_up(T, 128) * f32)  # b_e, v_e^T

    budget = _VMEM_LIMIT_BYTES // 2 - fixed
    bt = max(1, min(B, budget // max(per_batch, 1)))
    if B > 1:
        bt = min(bt, pl.cdiv(B, 2))   # keep >= 2 parallel steps for v7x megacore
    while B % bt:                     # keep the grid evenly tiled
        bt -= 1
    return bt


def temporal_attention(x, U1, U2, U3, b_e, v_e):
    B, T, V, F = x.shape
    K = V * F

    # Free contiguous-dim merge (no HBM pass, no transpose).
    x_flat = x.reshape(B, T, K)

    # Precompute the Kronecker-structured weights (tiny, once, plain JAX):
    #   lhs[b,t,v'] = sum_{v,f} x[b,t,v,f] * U1[v] * U2[f,v']
    #   rhs[b,t,u]  = sum_{v,f} x[b,t,v,f] * U3[f] * delta(v,u)
    U1f = U1.astype(jnp.float32).reshape(V)
    U2f = U2.astype(jnp.float32)                         # (F, V)
    U3f = U3.astype(jnp.float32).reshape(F)
    W12 = (U1f[:, None, None] * U2f[None, :, :]).reshape(K, V)
    W3 = (jnp.eye(V, dtype=jnp.float32)[:, None, :]
          * U3f[None, :, None]).reshape(K, V)
    be_f = b_e.astype(jnp.float32)                       # (1, T, T)
    vet = v_e.astype(jnp.float32).T                      # (T, T), pre-transposed

    bt = _pick_block_batch(B, T, V, F)
    grid = (B // bt,)

    return pl.pallas_call(
        temporal_attention_kernel,
        out_shape=jax.ShapeDtypeStruct((B, T, T), jnp.float32),
        grid=grid,
        in_specs=[
            pl.BlockSpec((bt, T, K), lambda b: (b, 0, 0)),
            pl.BlockSpec((K, V), lambda b: (0, 0)),
            pl.BlockSpec((K, V), lambda b: (0, 0)),
            pl.BlockSpec((1, T, T), lambda b: (0, 0, 0)),
            pl.BlockSpec((T, T), lambda b: (0, 0)),
        ],
        out_specs=pl.BlockSpec((bt, T, T), lambda b: (b, 0, 0)),
        compiler_params=pltpu.CompilerParams(
            dimension_semantics=("parallel",),
            vmem_limit_bytes=_VMEM_LIMIT_BYTES),
    )(x_flat, W12, W3, be_f, vet)


def temporal_attention_ref(x, U1, U2, U3, b_e, v_e):
    """Pure-JAX transcription of the PyTorch forward (for validation)."""
    B, T, V, F = x.shape
    a = jnp.transpose(x, (0, 1, 3, 2))                    # (B, T, F, V)
    lhs = jnp.matmul(a, U1).reshape(B, T, F)
    lhs = jnp.matmul(lhs, U2)                             # (B, T, V)
    b = jnp.transpose(x, (2, 0, 3, 1))                    # (V, B, F, T)
    zj = U3[:, 0]
    rhs = jnp.einsum('f,vbft->vbt', zj, b)
    rhs = jnp.transpose(rhs, (1, 0, 2))                   # (B, V, T)
    product = jnp.matmul(lhs, rhs)                        # (B, T, T)
    product = jax.nn.sigmoid(product + b_e)
    product = jnp.transpose(product, (1, 2, 0))           # (T, T, B)
    product = jnp.einsum('ik,tkb->tib', v_e, product)
    s = jnp.transpose(product, (2, 0, 1))                 # (B, T, T)
    s = s - jnp.max(s, axis=1, keepdims=True)
    e = jnp.exp(s)
    return e / jnp.sum(e, axis=1, keepdims=True)


def xavier_uniform(key, shape, gain=1.414):
    """Deterministic xavier_uniform_ equivalent (fan from first two/last dims)."""
    if len(shape) == 2:
        fan_out, fan_in = shape
        rf = 1
    else:
        fan_out, fan_in = shape[0], shape[1]
        rf = int(np.prod(shape[2:]))
    bound = gain * np.sqrt(6.0 / ((fan_in + fan_out) * rf))
    return jax.random.uniform(key, shape, jnp.float32, -bound, bound)


if __name__ == "__main__":
    # Shapes consistent with the module docstring: (B, T, V, F)
    B, T, V, F = 2, 5, 26, 9

    key = jax.random.PRNGKey(0)
    kx, k1, k2, k3, kb, kv = jax.random.split(key, 6)

    x = jax.random.normal(kx, (B, T, V, F), jnp.float32)
    U1 = xavier_uniform(k1, (V, 1))
    U2 = xavier_uniform(k2, (F, V))
    U3 = xavier_uniform(k3, (F, 1))
    b_e = xavier_uniform(kb, (1, T, T))
    v_e = xavier_uniform(kv, (T, T))

    out = jax.block_until_ready(temporal_attention(x, U1, U2, U3, b_e, v_e))
    ref = jax.block_until_ready(temporal_attention_ref(x, U1, U2, U3, b_e, v_e))

    np.testing.assert_allclose(np.asarray(out), np.asarray(ref),
                               rtol=1e-5, atol=1e-5)
    assert out.shape == (B, T, T)
    print("KERNEL_OK")
</pallas_src>

<mosaic_0001>
module attributes {stable_mosaic.version = 11 : i64} {
  func.func @temporal_attention_kernel(%arg0: i32, %arg1: memref<1x5x234xf32, #tpu.memory_space<vmem>>, %arg2: memref<234x26xf32, #tpu.memory_space<vmem>>, %arg3: memref<234x26xf32, #tpu.memory_space<vmem>>, %arg4: memref<1x5x5xf32, #tpu.memory_space<vmem>>, %arg5: memref<5x5xf32, #tpu.memory_space<vmem>>, %arg6: memref<1x5x5xf32, #tpu.memory_space<vmem>>) attributes {dimension_semantics = [#tpu.dimension_semantics<parallel>], iteration_bounds = array<i64: 2>, scalar_prefetch = 0 : i64, scratch_operands = 0 : i64, tpu.core_type = #tpu.core_type<tc>, window_params = [{transform_indices = @transform_0, window_bounds = array<i64: 1, 5, 234>}, {pipeline_mode = #tpu.pipeline_mode<synchronous>, transform_indices = @transform_1, window_bounds = array<i64: 234, 26>}, {pipeline_mode = #tpu.pipeline_mode<synchronous>, transform_indices = @transform_2, window_bounds = array<i64: 234, 26>}, {pipeline_mode = #tpu.pipeline_mode<synchronous>, transform_indices = @transform_3, window_bounds = array<i64: 1, 5, 5>}, {pipeline_mode = #tpu.pipeline_mode<synchronous>, transform_indices = @transform_4, window_bounds = array<i64: 5, 5>}, {transform_indices = @transform_5, window_bounds = array<i64: 1, 5, 5>}]} {
    %c0 = arith.constant 0 : index
    %c0_0 = arith.constant 0 : index
    %c0_1 = arith.constant 0 : index
    %0 = vector.load %arg1[%c0, %c0_0, %c0_1] : memref<1x5x234xf32, #tpu.memory_space<vmem>>, vector<1x5x234xf32>
    %1 = vector.shape_cast %0 : vector<1x5x234xf32> to vector<5x234xf32>
    %c0_2 = arith.constant 0 : index
    %c0_3 = arith.constant 0 : index
    %2 = vector.load %arg2[%c0_2, %c0_3] : memref<234x26xf32, #tpu.memory_space<vmem>>, vector<234x26xf32>
    %cst = arith.constant dense<0.000000e+00> : vector<5x26xf32>
    %3 = tpu.matmul %1, %2, %cst {dimension_numbers = #tpu.dot_dimension_numbers<[1], [0], [0], [1], [0, 0, 1, 1], [], []>} : vector<5x234xf32>, vector<234x26xf32>, vector<5x26xf32> -> vector<5x26xf32>
    %4 = vector.shape_cast %3 : vector<5x26xf32> to vector<1x5x26xf32>
    %c0_4 = arith.constant 0 : index
    %c0_5 = arith.constant 0 : index
    %5 = vector.load %arg3[%c0_4, %c0_5] : memref<234x26xf32, #tpu.memory_space<vmem>>, vector<234x26xf32>
    %cst_6 = arith.constant dense<0.000000e+00> : vector<5x26xf32>
    %6 = tpu.matmul %1, %5, %cst_6 {dimension_numbers = #tpu.dot_dimension_numbers<[1], [0], [0], [1], [0, 0, 1, 1], [], []>} : vector<5x234xf32>, vector<234x26xf32>, vector<5x26xf32> -> vector<5x26xf32>
    %7 = vector.shape_cast %6 : vector<5x26xf32> to vector<1x5x26xf32>
    %8 = vector.shape_cast %4 : vector<1x5x26xf32> to vector<1x5x1x26xf32>
    %9 = vector.shape_cast %7 : vector<1x5x26xf32> to vector<1x1x5x26xf32>
    %10 = vector.broadcast %8 : vector<1x5x1x26xf32> to vector<1x5x5x26xf32>
    %11 = vector.broadcast %9 : vector<1x1x5x26xf32> to vector<1x5x5x26xf32>
    %12 = arith.mulf %10, %11 : vector<1x5x5x26xf32>
    %cst_7 = arith.constant dense<0.000000e+00> : vector<1x5x5xf32>
    %13 = vector.multi_reduction <add>, %12, %cst_7 [3] : vector<1x5x5x26xf32> to vector<1x5x5xf32>
    %c0_8 = arith.constant 0 : index
    %c0_9 = arith.constant 0 : index
    %c0_10 = arith.constant 0 : index
    %14 = vector.load %arg4[%c0_8, %c0_9, %c0_10] : memref<1x5x5xf32, #tpu.memory_space<vmem>>, vector<1x5x5xf32>
    %15 = arith.addf %13, %14 : vector<1x5x5xf32>
    %16 = arith.negf %15 : vector<1x5x5xf32>
    %17 = math.exp %16 : vector<1x5x5xf32>
    %cst_11 = arith.constant 1.000000e+00 : f32
    %18 = vector.broadcast %cst_11 : f32 to vector<1x5x5xf32>
    %19 = arith.addf %18, %17 : vector<1x5x5xf32>
    %20 = arith.divf %18, %19 : vector<1x5x5xf32>
    %21 = vector.shape_cast %20 : vector<1x5x5xf32> to vector<5x5xf32>
    %c0_12 = arith.constant 0 : index
    %c0_13 = arith.constant 0 : index
    %22 = vector.load %arg5[%c0_12, %c0_13] : memref<5x5xf32, #tpu.memory_space<vmem>>, vector<5x5xf32>
    %cst_14 = arith.constant dense<0.000000e+00> : vector<5x5xf32>
    %23 = tpu.matmul %21, %22, %cst_14 {dimension_numbers = #tpu.dot_dimension_numbers<[1], [0], [0], [1], [0, 0, 1, 1], [], []>} : vector<5x5xf32>, vector<5x5xf32>, vector<5x5xf32> -> vector<5x5xf32>
    %24 = vector.shape_cast %23 : vector<5x5xf32> to vector<1x5x5xf32>
    %cst_15 = arith.constant dense<0xFF800000> : vector<1x5xf32>
    %25 = vector.multi_reduction <maximumf>, %24, %cst_15 [1] : vector<1x5x5xf32> to vector<1x5xf32>
    %26 = vector.shape_cast %25 : vector<1x5xf32> to vector<1x1x5xf32>
    %27 = vector.broadcast %26 : vector<1x1x5xf32> to vector<1x5x5xf32>
    %28 = arith.subf %24, %27 : vector<1x5x5xf32>
    %29 = math.exp %28 : vector<1x5x5xf32>
    %cst_16 = arith.constant dense<0.000000e+00> : vector<1x5xf32>
    %30 = vector.multi_reduction <add>, %29, %cst_16 [1] : vector<1x5x5xf32> to vector<1x5xf32>
    %31 = vector.shape_cast %30 : vector<1x5xf32> to vector<1x1x5xf32>
    %32 = tpu.reciprocal %31 : vector<1x1x5xf32> -> vector<1x1x5xf32>
    %33 = vector.broadcast %32 : vector<1x1x5xf32> to vector<1x5x5xf32>
    %34 = arith.mulf %29, %33 : vector<1x5x5xf32>
    %c0_17 = arith.constant 0 : index
    %c0_18 = arith.constant 0 : index
    %c0_19 = arith.constant 0 : index
    %35 = vector.load %arg6[%c0_17, %c0_18, %c0_19] : memref<1x5x5xf32, #tpu.memory_space<vmem>>, vector<1x5x5xf32>
    tpu.vector_store %arg6[%c0_17, %c0_18, %c0_19], %34 {strides = array<i32>} : memref<1x5x5xf32, #tpu.memory_space<vmem>>, vector<1x5x5xf32>,
    return
  }
  func.func @transform_0(%arg0: i32) -> (i32, i32, i32) {
    %c0_i32 = arith.constant 0 : i32
    %c0_i32_0 = arith.constant 0 : i32
    %c0_i32_1 = arith.constant 0 : i32
    return %arg0, %c0_i32, %c0_i32_0 : i32, i32, i32
  }
  func.func @transform_1(%arg0: i32) -> (i32, i32) {
    %c0_i32 = arith.constant 0 : i32
    %c0_i32_0 = arith.constant 0 : i32
    %c0_i32_1 = arith.constant 0 : i32
    return %c0_i32, %c0_i32_0 : i32, i32
  }
  func.func @transform_2(%arg0: i32) -> (i32, i32) {
    %c0_i32 = arith.constant 0 : i32
    %c0_i32_0 = arith.constant 0 : i32
    %c0_i32_1 = arith.constant 0 : i32
    return %c0_i32, %c0_i32_0 : i32, i32
  }
  func.func @transform_3(%arg0: i32) -> (i32, i32, i32) {
    %c0_i32 = arith.constant 0 : i32
    %c0_i32_0 = arith.constant 0 : i32
    %c0_i32_1 = arith.constant 0 : i32
    %c0_i32_2 = arith.constant 0 : i32
    return %c0_i32, %c0_i32_0, %c0_i32_1 : i32, i32, i32
  }
  func.func @transform_4(%arg0: i32) -> (i32, i32) {
    %c0_i32 = arith.constant 0 : i32
    %c0_i32_0 = arith.constant 0 : i32
    %c0_i32_1 = arith.constant 0 : i32
    return %c0_i32, %c0_i32_0 : i32, i32
  }
  func.func @transform_5(%arg0: i32) -> (i32, i32, i32) {
    %c0_i32 = arith.constant 0 : i32
    %c0_i32_0 = arith.constant 0 : i32
    %c0_i32_1 = arith.constant 0 : i32
    return %arg0, %c0_i32, %c0_i32_0 : i32, i32, i32
  }
}

</mosaic_0001>

<llo_original>
// kernel: tpu_custom_call.1
$region0: #{tpu_custom_call.1}
  #allocation0 [shape = 'u32[]', space=smem, size = 0x4, offset = 0x4, fixed_abs, tag = 'smem constant byte address 0x4 - core index']
  #allocation1 [shape = 'u32[144,128]{1,0:T(1,128)}', space=vmem, size = 0x12000, scoped, tag = 'internal scratch']
  %s0 = inlined_call_operand.vmem [shape: f32[2,5,234], index: 0, kind: input, shape index: {}]
  %s1 = inlined_call_operand.vmem [shape: f32[234,26], index: 1, kind: input, shape index: {}]
  %s2 = inlined_call_operand.vmem [shape: f32[234,26], index: 2, kind: input, shape index: {}]
  %s3 = inlined_call_operand.vmem [shape: f32[1,5,5], index: 3, kind: input, shape index: {}]
  %s4 = inlined_call_operand.vmem [shape: f32[5,5], index: 4, kind: input, shape index: {}]
  %s5 = inlined_call_operand.vmem [shape: f32[2,5,5], index: 5, kind: output, shape index: {}]
  %s6 = sld [smem:[#allocation0]]
  $region53: #{tpu_custom_call.1} parent=0
    _
  %s8 = ssub.s32 1, %s6
  %s9 = scalar_select 0, %s8, %s6
  loop: start=0, step=1, limit=4
  $region2: #{tpu_custom_call.1} parent=0 // loop_pre_header
    _
  $region3: #{tpu_custom_call.1} parent=0 // loop_header
    %s11 = sphi 0, %s15
    %p12 = scmp.ge.s32.totalorder %s11, 4
    %s21 = sphi 0, %s23
    %s24 = sphi 0, %s21
    %s25 = sphi 0, %s24
    %s41 = sphi 0, %s25
    %s45 = sphi 0, %s45
    %s47 = sphi 0, %s45
    %s48 = sphi 0, %s47
    %s62 = sphi 0, %s48
    %s66 = sphi 0, %s66
    %s68 = sphi 0, %s66
    %s69 = sphi 0, %s68
    %s83 = sphi 0, %s69
    %s87 = sphi 0, %s87
    %s89 = sphi 0, %s87
    %s90 = sphi 0, %s89
    %s104 = sphi 0, %s90
    %s108 = sphi 0, %s108
    %s110 = sphi 0, %s108
    %s111 = sphi 0, %s110
    %s125 = sphi 0, %s111
    %s131 = sphi 0, %s133
    %s134 = sphi 0, %s131
    %s135 = sphi 0, %s134
    %s151 = sphi 0, %s135
  $region4: #{tpu_custom_call.1} parent=0 // loop_header_branch
    %14 = sbr.rel (%p12) target = $region8
  $region5: #{tpu_custom_call.1} parent=0 // loop_body
    %s16 = ssub.s32 %s11, 1
    %s17 = ssub.s32 %s11, 2
    %s18 = sadd.s32 %s11, 1
    %s19 = ssub.s32 %s11, %s18
    %p20 = scmp.eq.s32.totalorder %s19, 0
    %s22 = sadd.s32 %s21, 1
    %s23 = scalar_select %p20, %s21, %s22
    %p26 = pneg %p20
    %p27 = scmp.eq.s32.totalorder %s11, 1
    %p28 = por %p26, %p27
    %p29 = scmp.ne.s32.totalorder %s21, %s24
    %p30 = scmp.eq.s32.totalorder %s11, 0
    %p31 = por %p29, %p30
    %p32 = scmp.ne.s32.totalorder %s21, %s24
    %p33 = scmp.eq.s32.totalorder %s16, 1
    %p34 = por %p32, %p33
    %p35 = scmp.ne.s32.totalorder %s24, %s25
    %p36 = scmp.eq.s32.totalorder %s16, 0
    %p37 = por %p35, %p36
    %p38 = scmp.ne.s32.totalorder %s24, %s25
    %p39 = scmp.eq.s32.totalorder %s17, 1
    %p40 = por %p38, %p39
    %p42 = scmp.ne.s32.totalorder %s25, %s41
    %p43 = scmp.eq.s32.totalorder %s17, 0
    %p44 = por %p42, %p43
    %s46 = sadd.s32 %s45, 1
    %p49 = scmp.eq.s32.totalorder %s11, 1
    %p50 = scmp.ne.s32.totalorder %s45, %s47
    %p51 = scmp.eq.s32.totalorder %s11, 0
    %p52 = por %p50, %p51
    %p53 = scmp.ne.s32.totalorder %s45, %s47
    %p54 = scmp.eq.s32.totalorder %s16, 1
    %p55 = por %p53, %p54
    %p56 = scmp.ne.s32.totalorder %s47, %s48
    %p57 = scmp.eq.s32.totalorder %s16, 0
    %p58 = por %p56, %p57
    %p59 = scmp.ne.s32.totalorder %s47, %s48
    %p60 = scmp.eq.s32.totalorder %s17, 1
    %p61 = por %p59, %p60
    %p63 = scmp.ne.s32.totalorder %s48, %s62
    %p64 = scmp.eq.s32.totalorder %s17, 0
    %p65 = por %p63, %p64
    %s67 = sadd.s32 %s66, 1
    %p70 = scmp.eq.s32.totalorder %s11, 1
    %p71 = scmp.ne.s32.totalorder %s66, %s68
    %p72 = scmp.eq.s32.totalorder %s11, 0
    %p73 = por %p71, %p72
    %p74 = scmp.ne.s32.totalorder %s66, %s68
    %p75 = scmp.eq.s32.totalorder %s16, 1
    %p76 = por %p74, %p75
    %p77 = scmp.ne.s32.totalorder %s68, %s69
    %p78 = scmp.eq.s32.totalorder %s16, 0
    %p79 = por %p77, %p78
    %p80 = scmp.ne.s32.totalorder %s68, %s69
    %p81 = scmp.eq.s32.totalorder %s17, 1
    %p82 = por %p80, %p81
    %p84 = scmp.ne.s32.totalorder %s69, %s83
    %p85 = scmp.eq.s32.totalorder %s17, 0
    %p86 = por %p84, %p85
    %s88 = sadd.s32 %s87, 1
    %p91 = scmp.eq.s32.totalorder %s11, 1
    %p92 = scmp.ne.s32.totalorder %s87, %s89
    %p93 = scmp.eq.s32.totalorder %s11, 0
    %p94 = por %p92, %p93
    %p95 = scmp.ne.s32.totalorder %s87, %s89
    %p96 = scmp.eq.s32.totalorder %s16, 1
    %p97 = por %p95, %p96
    %p98 = scmp.ne.s32.totalorder %s89, %s90
    %p99 = scmp.eq.s32.totalorder %s16, 0
    %p100 = por %p98, %p99
    %p101 = scmp.ne.s32.totalorder %s89, %s90
    %p102 = scmp.eq.s32.totalorder %s17, 1
    %p103 = por %p101, %p102
    %p105 = scmp.ne.s32.totalorder %s90, %s104
    %p106 = scmp.eq.s32.totalorder %s17, 0
    %p107 = por %p105, %p106
    %s109 = sadd.s32 %s108, 1
    %p112 = scmp.eq.s32.totalorder %s11, 1
    %p113 = scmp.ne.s32.totalorder %s108, %s110
    %p114 = scmp.eq.s32.totalorder %s11, 0
    %p115 = por %p113, %p114
    %p116 = scmp.ne.s32.totalorder %s108, %s110
    %p117 = scmp.eq.s32.totalorder %s16, 1
    %p118 = por %p116, %p117
    %p119 = scmp.ne.s32.totalorder %s110, %s111
    %p120 = scmp.eq.s32.totalorder %s16, 0
    %p121 = por %p119, %p120
    %p122 = scmp.ne.s32.totalorder %s110, %s111
    %p123 = scmp.eq.s32.totalorder %s17, 1
    %p124 = por %p122, %p123
    %p126 = scmp.ne.s32.totalorder %s111, %s125
    %p127 = scmp.eq.s32.totalorder %s17, 0
    %p128 = por %p126, %p127
    %s129 = ssub.s32 %s11, %s18
    %p130 = scmp.eq.s32.totalorder %s129, 0
    %s132 = sadd.s32 %s131, 1
    %s133 = scalar_select %p130, %s131, %s132
    %p136 = pneg %p130
    %p137 = scmp.eq.s32.totalorder %s11, 1
    %p138 = por %p136, %p137
    %p139 = scmp.ne.s32.totalorder %s131, %s134
    %p140 = scmp.eq.s32.totalorder %s11, 0
    %p141 = por %p139, %p140
    %p142 = scmp.ne.s32.totalorder %s131, %s134
    %p143 = scmp.eq.s32.totalorder %s16, 1
    %p144 = por %p142, %p143
    %p145 = scmp.ne.s32.totalorder %s134, %s135
    %p146 = scmp.eq.s32.totalorder %s16, 0
    %p147 = por %p145, %p146
    %p148 = scmp.ne.s32.totalorder %s134, %s135
    %p149 = scmp.eq.s32.totalorder %s17, 1
    %p150 = por %p148, %p149
    %p152 = scmp.ne.s32.totalorder %s135, %s151
    %p153 = scmp.eq.s32.totalorder %s17, 0
    %p154 = por %p152, %p153
    %p155 = scmp.le.s32.totalorder 1, %s11
    %p156 = scmp.lt.s32.totalorder %s11, 3
    %p157 = pnand %p155, %p156
    %p158 = pneg %p157
    // Predicated region
    $region9: #{tpu_custom_call.1} parent=5 // pred_check
      _
    $region10: #{tpu_custom_call.1} parent=5 // pred_check_branch
      %160 = sbr.rel (%p157) target = $region12
    $region11: #{tpu_custom_call.1} parent=5 // pred_region
      %s161 = ssub.s32 %s11, 1
      // Predicated region
      $region13: #{tpu_custom_call.1} parent=11 // pred_check
        %p162 = pneg %p58
      $region14: #{tpu_custom_call.1} parent=11 // pred_check_branch
        %164 = sbr.rel (%p162) target = $region16
      $region15: #{tpu_custom_call.1} parent=11 // pred_region
        _
      $region16: #{tpu_custom_call.1} parent=11 // pred_fallthru
        _
      // Predicated region
      $region17: #{tpu_custom_call.1} parent=11 // pred_check
        %p165 = pneg %p79
      $region18: #{tpu_custom_call.1} parent=11 // pred_check_branch
        %167 = sbr.rel (%p165) target = $region20
      $region19: #{tpu_custom_call.1} parent=11 // pred_region
        _
      $region20: #{tpu_custom_call.1} parent=11 // pred_fallthru
        _
      // Predicated region
      $region21: #{tpu_custom_call.1} parent=11 // pred_check
        %p168 = pneg %p100
      $region22: #{tpu_custom_call.1} parent=11 // pred_check_branch
        %170 = sbr.rel (%p168) target = $region24
      $region23: #{tpu_custom_call.1} parent=11 // pred_region
        _
      $region24: #{tpu_custom_call.1} parent=11 // pred_fallthru
        _
      // Predicated region
      $region25: #{tpu_custom_call.1} parent=11 // pred_check
        %p171 = pneg %p121
      $region26: #{tpu_custom_call.1} parent=11 // pred_check_branch
        %173 = sbr.rel (%p171) target = $region28
      $region27: #{tpu_custom_call.1} parent=11 // pred_region
        _
      $region28: #{tpu_custom_call.1} parent=11 // pred_fallthru
        _
    $region12: #{tpu_custom_call.1} parent=5 // pred_fallthru
      _
    %p174 = scmp.lt.s32.totalorder %s11, 2
    // Predicated region
    $region29: #{tpu_custom_call.1} parent=5 // pred_check
      %p175 = pneg %p174
    $region30: #{tpu_custom_call.1} parent=5 // pred_check_branch
      %177 = sbr.rel (%p175) target = $region32
    $region31: #{tpu_custom_call.1} parent=5 // pred_region
      // Predicated region
      $region33: #{tpu_custom_call.1} parent=31 // pred_check
        %p178 = pneg %p31
      $region34: #{tpu_custom_call.1} parent=31 // pred_check_branch
        %180 = sbr.rel (%p178) target = $region36
      $region35: #{tpu_custom_call.1} parent=31 // pred_region
        %p181 = scmp.lt.s32.totalorder %s11, 1
        %s182 = scalar_select %p181, %s11, 1
        %s183 = smul.addr %s182, 2
        %s184 = smul.addr %s183, 8
        %s185 = scalar_lea.vmem %s0, %s184
      $region36: #{tpu_custom_call.1} parent=31 // pred_fallthru
        _
    $region32: #{tpu_custom_call.1} parent=5 // pred_fallthru
      _
    %p186 = scmp.le.s32.totalorder 1, %s11
    %p187 = scmp.lt.s32.totalorder %s11, 3
    %p188 = pnand %p186, %p187
    %p189 = pneg %p188
    // Predicated region
    $region37: #{tpu_custom_call.1} parent=5 // pred_check
      _
    $region38: #{tpu_custom_call.1} parent=5 // pred_check_branch
      %191 = sbr.rel (%p188) target = $region40
    $region39: #{tpu_custom_call.1} parent=5 // pred_region
      %s192 = ssub.s32 %s11, 1
      %p193 = scmp.lt.s32.totalorder %s16, 1
      %s194 = scalar_select %p193, %s16, 1
      %s195 = smul.addr %s194, 2
      %s196 = smul.addr %s195, 8
      %s197 = scalar_lea.vmem %s0, %s196
      %p198 = pneg %p37
      %p199 = pneg %p34
      %p200 = pneg %p58
      %p201 = pneg %p55
      %p202 = pneg %p79
      %p203 = pneg %p76
      %p204 = pneg %p100
      %p205 = pneg %p97
      %p206 = pneg %p121
      %p207 = pneg %p118
      %p208 = pneg %p147
      %p209 = pneg %p144
      %p210 = scmp.lt.s32.totalorder %s16, 1
      %s211 = scalar_select %p210, %s16, 1
      %s212 = smul.addr %s211, 8
      %s213 = scalar_lea.vmem %s5, %s212
      %p214 = scmp.lt.s32.totalorder %s16, 1
      %s215 = scalar_select %p214, %s16, 1
      %s216 = smul.addr %s215, 2
      %s217 = smul.addr %s216, 8
      %s218 = scalar_lea.vmem %s0, %s217
      %p219 = scmp.lt.s32.totalorder %s16, 1
      %s220 = scalar_select %p219, %s16, 1
      %s221 = smul.addr %s220, 8
      %s222 = scalar_lea.vmem %s5, %s221
      %v223 = vld [vmem:[%s218] sm:$0x1f]
      %v224 = vld [vmem:[%s218 + $0x8] sm:$0x1f]
      %v225 = vld [vmem:[%s1] sm:$0xff]
      %v226 = vld [vmem:[%s1 + $0x8] sm:$0xff]
      %v227 = vld [vmem:[%s1 + $0x10] sm:$0xff]
      %v228 = vld [vmem:[%s1 + $0x18] sm:$0xff]
      %v229 = vld [vmem:[%s1 + $0x20] sm:$0xff]
      %v230 = vld [vmem:[%s1 + $0x28] sm:$0xff]
      %v231 = vld [vmem:[%s1 + $0x30] sm:$0xff]
      %v232 = vld [vmem:[%s1 + $0x38] sm:$0xff]
      %v233 = vld [vmem:[%s1 + $0x40] sm:$0xff]
      %v234 = vld [vmem:[%s1 + $0x48] sm:$0xff]
      %v235 = vld [vmem:[%s1 + $0x50] sm:$0xff]
      %v236 = vld [vmem:[%s1 + $0x58] sm:$0xff]
      %v237 = vld [vmem:[%s1 + $0x60] sm:$0xff]
      %v238 = vld [vmem:[%s1 + $0x68] sm:$0xff]
      %v239 = vld [vmem:[%s1 + $0x70] sm:$0xff]
      %v240 = vld [vmem:[%s1 + $0x78] sm:$0xff]
      %v241 = vld [vmem:[%s1 + $0x80] sm:$0xff]
      %v242 = vld [vmem:[%s1 + $0x88] sm:$0xff]
      %v243 = vld [vmem:[%s1 + $0x90] sm:$0xff]
      %v244 = vld [vmem:[%s1 + $0x98] sm:$0xff]
      %v245 = vld [vmem:[%s1 + $0xa0] sm:$0xff]
      %v246 = vld [vmem:[%s1 + $0xa8] sm:$0xff]
      %v247 = vld [vmem:[%s1 + $0xb0] sm:$0xff]
      %v248 = vld [vmem:[%s1 + $0xb8] sm:$0xff]
      %v249 = vld [vmem:[%s1 + $0xc0] sm:$0xff]
      %v250 = vld [vmem:[%s1 + $0xc8] sm:$0xff]
      %v251 = vld [vmem:[%s1 + $0xd0] sm:$0xff]
      %v252 = vld [vmem:[%s1 + $0xd8] sm:$0xff]
      %v253 = vld [vmem:[%s1 + $0xe0] sm:$0xff]
      %v254 = vld [vmem:[%s1 + $0xe8] sm:$0x3]
      %vm255 = vcmask 867328
      %v257 = vsel %vm255, %v224, 0
      %vm259 = vcmask 1041408
      %v261 = vsel %vm259, %v254, 0
      %263 = vmatprep.subr.mxu0 0.0
      %264 = vmatpush1.msra.mxu0 %v240
      %265 = vmatprep.subr.mxu0 0.0
      %266 = vmatpush1.msra.mxu0 %v239
      %267 = vmatprep.subr.mxu0 0.0
      %268 = vmatpush1.msra.mxu0 %v238
      %269 = vmatprep.subr.mxu0 0.0
      %270 = vmatpush1.msra.mxu0 %v237
      %271 = vmatprep.subr.mxu0 0.0
      %272 = vmatpush1.msra.mxu0 %v236
      %273 = vmatprep.subr.mxu0 0.0
      %274 = vmatpush1.msra.mxu0 %v235
      %275 = vmatprep.subr.mxu0 0.0
      %276 = vmatpush1.msra.mxu0 %v234
      %277 = vmatprep.subr.mxu0 0.0
      %278 = vmatpush1.msra.mxu0 %v233
      %279 = vmatprep.subr.mxu0 0.0
      %280 = vmatpush1.msra.mxu0 %v232
      %281 = vmatprep.subr.mxu0 0.0
      %282 = vmatpush1.msra.mxu0 %v231
      %283 = vmatprep.subr.mxu0 0.0
      %284 = vmatpush1.msra.mxu0 %v230
      %285 = vmatprep.subr.mxu0 0.0
      %286 = vmatpush1.msra.mxu0 %v229
      %287 = vmatprep.subr.mxu0 0.0
      %288 = vmatpush1.msra.mxu0 %v228
      %289 = vmatprep.subr.mxu0 0.0
      %290 = vmatpush1.msra.mxu0 %v227
      %291 = vmatprep.subr.mxu0 0.0
      %292 = vmatpush1.msra.mxu0 %v226
      %293 = vmatprep.subr.mxu0 0.0
      %294 = vmatpush1.msra.mxu0 %v225
      %295 = vmatprep.subr.mxu0 0.0
      %296 = vmatpush2.msra.mxu0 0.0
      %297 = vmatprep.subr.mxu0 0.0
      %298 = vmatpush2.msra.mxu0 0.0
      %299 = vmatprep.subr.mxu0 0.0
      %300 = vmatpush2.msra.mxu0 %v261
      %301 = vmatprep.subr.mxu0 0.0
      %302 = vmatpush2.msra.mxu0 %v253
      %303 = vmatprep.subr.mxu0 0.0
      %304 = vmatpush2.msra.mxu0 %v252
      %305 = vmatprep.subr.mxu0 0.0
      %306 = vmatpush2.msra.mxu0 %v251
      %307 = vmatprep.subr.mxu0 0.0
      %308 = vmatpush2.msra.mxu0 %v250
      %309 = vmatprep.subr.mxu0 0.0
      %310 = vmatpush2.msra.mxu0 %v249
      %311 = vmatprep.subr.mxu0 0.0
      %312 = vmatpush2.msra.mxu0 %v248
      %313 = vmatprep.subr.mxu0 0.0
      %314 = vmatpush2.msra.mxu0 %v247
      %315 = vmatprep.subr.mxu0 0.0
      %316 = vmatpush2.msra.mxu0 %v246
      %317 = vmatprep.subr.mxu0 0.0
      %318 = vmatpush2.msra.mxu0 %v245
      %319 = vmatprep.subr.mxu0 0.0
      %320 = vmatpush2.msra.mxu0 %v244
      %321 = vmatprep.subr.mxu0 0.0
      %322 = vmatpush2.msra.mxu0 %v243
      %323 = vmatprep.subr.mxu0 0.0
      %324 = vmatpush2.msra.mxu0 %v242
      %325 = vmatprep.subr.mxu0 0.0
      %326 = vmatpush2.msra.mxu0 %v241
      %327 = vmatprep.mubr.f32.mxu0 %v257
      %328 = vmatmul.mubr.f32.gmra.mxu0 %v223
      %v329 = vpop.f32.mrf.mxu0
      %v330 = vadd.f32 0.0, %v329
      %v331 = vpop.f32.mrf.mxu0
      %332 = vdwg.mxu0
      %v333 = vld [vmem:[%s2] sm:$0xff]
      %v334 = vld [vmem:[%s2 + $0x8] sm:$0xff]
      %v335 = vld [vmem:[%s2 + $0x10] sm:$0xff]
      %v336 = vld [vmem:[%s2 + $0x18] sm:$0xff]
      %v337 = vld [vmem:[%s2 + $0x20] sm:$0xff]
      %v338 = vld [vmem:[%s2 + $0x28] sm:$0xff]
      %v339 = vld [vmem:[%s2 + $0x30] sm:$0xff]
      %v340 = vld [vmem:[%s2 + $0x38] sm:$0xff]
      %v341 = vld [vmem:[%s2 + $0x40] sm:$0xff]
      %v342 = vld [vmem:[%s2 + $0x48] sm:$0xff]
      %v343 = vld [vmem:[%s2 + $0x50] sm:$0xff]
      %v344 = vld [vmem:[%s2 + $0x58] sm:$0xff]
      %v345 = vld [vmem:[%s2 + $0x60] sm:$0xff]
      %v346 = vld [vmem:[%s2 + $0x68] sm:$0xff]
      %v347 = vld [vmem:[%s2 + $0x70] sm:$0xff]
      %v348 = vld [vmem:[%s2 + $0x78] sm:$0xff]
      %v349 = vld [vmem:[%s2 + $0x80] sm:$0xff]
      %v350 = vld [vmem:[%s2 + $0x88] sm:$0xff]
      %v351 = vld [vmem:[%s2 + $0x90] sm:$0xff]
      %v352 = vld [vmem:[%s2 + $0x98] sm:$0xff]
      %v353 = vld [vmem:[%s2 + $0xa0] sm:$0xff]
      %v354 = vld [vmem:[%s2 + $0xa8] sm:$0xff]
      %v355 = vld [vmem:[%s2 + $0xb0] sm:$0xff]
      %v356 = vld [vmem:[%s2 + $0xb8] sm:$0xff]
      %v357 = vld [vmem:[%s2 + $0xc0] sm:$0xff]
      %v358 = vld [vmem:[%s2 + $0xc8] sm:$0xff]
      %v359 = vld [vmem:[%s2 + $0xd0] sm:$0xff]
      %v360 = vld [vmem:[%s2 + $0xd8] sm:$0xff]
      %v361 = vld [vmem:[%s2 + $0xe0] sm:$0xff]
      %v362 = vld [vmem:[%s2 + $0xe8] sm:$0x3]
      %v364 = vsel %vm259, %v362, 0
      %366 = vmatprep.subr.mxu0 0.0
      %367 = vmatpush1.msra.mxu0 %v348
      %368 = vmatprep.subr.mxu0 0.0
      %369 = vmatpush1.msra.mxu0 %v347
      %370 = vmatprep.subr.mxu0 0.0
      %371 = vmatpush1.msra.mxu0 %v346
      %372 = vmatprep.subr.mxu0 0.0
      %373 = vmatpush1.msra.mxu0 %v345
      %374 = vmatprep.subr.mxu0 0.0
      %375 = vmatpush1.msra.mxu0 %v344
      %376 = vmatprep.subr.mxu0 0.0
      %377 = vmatpush1.msra.mxu0 %v343
      %378 = vmatprep.subr.mxu0 0.0
      %379 = vmatpush1.msra.mxu0 %v342
      %380 = vmatprep.subr.mxu0 0.0
      %381 = vmatpush1.msra.mxu0 %v341
      %382 = vmatprep.subr.mxu0 0.0
      %383 = vmatpush1.msra.mxu0 %v340
      %384 = vmatprep.subr.mxu0 0.0
      %385 = vmatpush1.msra.mxu0 %v339
      %386 = vmatprep.subr.mxu0 0.0
      %387 = vmatpush1.msra.mxu0 %v338
      %388 = vmatprep.subr.mxu0 0.0
      %389 = vmatpush1.msra.mxu0 %v337
      %390 = vmatprep.subr.mxu0 0.0
      %391 = vmatpush1.msra.mxu0 %v336
      %392 = vmatprep.subr.mxu0 0.0
      %393 = vmatpush1.msra.mxu0 %v335
      %394 = vmatprep.subr.mxu0 0.0
      %395 = vmatpush1.msra.mxu0 %v334
      %396 = vmatprep.subr.mxu0 0.0
      %397 = vmatpush1.msra.mxu0 %v333
      %398 = vmatprep.subr.mxu0 0.0
      %399 = vmatpush2.msra.mxu0 0.0
      %400 = vmatprep.subr.mxu0 0.0
      %401 = vmatpush2.msra.mxu0 0.0
      %402 = vmatprep.subr.mxu0 0.0
      %403 = vmatpush2.msra.mxu0 %v364
      %404 = vmatprep.subr.mxu0 0.0
      %405 = vmatpush2.msra.mxu0 %v361
      %406 = vmatprep.subr.mxu0 0.0
      %407 = vmatpush2.msra.mxu0 %v360
      %408 = vmatprep.subr.mxu0 0.0
      %409 = vmatpush2.msra.mxu0 %v359
      %410 = vmatprep.subr.mxu0 0.0
      %411 = vmatpush2.msra.mxu0 %v358
      %412 = vmatprep.subr.mxu0 0.0
      %413 = vmatpush2.msra.mxu0 %v357
      %414 = vmatprep.subr.mxu0 0.0
      %415 = vmatpush2.msra.mxu0 %v356
      %416 = vmatprep.subr.mxu0 0.0
      %417 = vmatpush2.msra.mxu0 %v355
      %418 = vmatprep.subr.mxu0 0.0
      %419 = vmatpush2.msra.mxu0 %v354
      %420 = vmatprep.subr.mxu0 0.0
      %421 = vmatpush2.msra.mxu0 %v353
      %422 = vmatprep.subr.mxu0 0.0
      %423 = vmatpush2.msra.mxu0 %v352
      %424 = vmatprep.subr.mxu0 0.0
      %425 = vmatpush2.msra.mxu0 %v351
      %426 = vmatprep.subr.mxu0 0.0
      %427 = vmatpush2.msra.mxu0 %v350
      %428 = vmatprep.subr.mxu0 0.0
      %429 = vmatpush2.msra.mxu0 %v349
      %430 = vmatprep.mubr.f32.mxu0 %v257
      %431 = vmatmul.mubr.f32.gmra.mxu0 %v223
      %v432 = vpop.f32.mrf.mxu0
      %v433 = vadd.f32 0.0, %v432
      %v434 = vpop.f32.mrf.mxu0
      %435 = vdwg.mxu0
      %v437 = vcombine.high %v330, %v330
      %v439 = vunpack.c.l.s4 1966171168
      %v440 = vunpack.c.0.s8 %v439
      %v441 = vlaneseq
      %v442 = vshrl.u32 %v441, 7
      %v443 = vsub.s32 %v440, %v442
      %v444 = vrot.slane %v330, %v443
      %v446 = vunpack.c.l.s4 1966171168
      %v447 = vunpack.c.0.s8 %v446
      %v448 = vlaneseq
      %v449 = vshrl.u32 %v448, 7
      %v450 = vsub.s32 %v447, %v449
      %v451 = vrot.slane %v437, %v450
      %v452 = vcombine.high %v444, %v444
      %v454 = vunpack.c.l.s4 1966171168
      %v455 = vunpack.c.0.s8 %v454
      %v456 = vlaneseq
      %v457 = vshrl.u32 %v456, 7
      %v458 = vsub.s32 %v455, %v457
      %v459 = vrot.slane %v444, %v458
      %v461 = vunpack.c.l.s4 1966171168
      %v462 = vunpack.c.0.s8 %v461
      %v463 = vlaneseq
      %v464 = vshrl.u32 %v463, 7
      %v465 = vsub.s32 %v462, %v464
      %v466 = vrot.slane %v451, %v465
      %v468 = vunpack.c.l.s4 1966171168
      %v469 = vunpack.c.0.s8 %v468
      %v470 = vlaneseq
      %v471 = vshrl.u32 %v470, 7
      %v472 = vsub.s32 %v469, %v471
      %v473 = vrot.slane %v452, %v472
      %v474 = vcombine.high %v459, %v459
      %v475 = vcombine.high %v473, %v473
      %v476 = vlaneseq
      %v477 = vshrl.u32 %v476, 7
      %v478 = vsub.s32 0, %v477
      %v479 = vrot.slane %v459, %v478
      %v480 = vlaneseq
      %v481 = vshrl.u32 %v480, 7
      %v482 = vsub.s32 0, %v481
      %v483 = vrot.slane %v473, %v482
      %v484 = vlaneseq
      %v485 = vshrl.u32 %v484, 7
      %v486 = vsub.s32 0, %v485
      %v487 = vrot.slane %v474, %v486
      %v488 = vlaneseq
      %v489 = vshrl.u32 %v488, 7
      %v490 = vsub.s32 0, %v489
      %v491 = vrot.slane %v475, %v490
      %v492 = vlaneseq
      %v493 = vshrl.u32 %v492, 7
      %v494 = vsub.s32 0, %v493
      %v495 = vrot.slane %v466, %v494
      %v501 = vmul.f32 %v479, %v433
      %v502 = vmul.f32 %v483, %v433
      %v503 = vmul.f32 %v487, %v433
      %v504 = vmul.f32 %v491, %v433
      %v505 = vmul.f32 %v495, %v433
      %vm506 = vcmask 208896
      %v507 = vsel %vm506, %v501, 0.0
      %508 = vadd.xlane.f32.xlu0 %v507
      %v509 = vpop.xlane.xlu0 %508
      %v510 = vsel %vm506, %v502, 0.0
      %511 = vadd.xlane.f32.xlu0 %v510
      %v512 = vpop.xlane.xlu0 %511
      %v513 = vsel %vm506, %v503, 0.0
      %514 = vadd.xlane.f32.xlu0 %v513
      %v515 = vpop.xlane.xlu0 %514
      %v516 = vsel %vm506, %v504, 0.0
      %517 = vadd.xlane.f32.xlu0 %v516
      %v518 = vpop.xlane.xlu0 %517
      %v519 = vsel %vm506, %v505, 0.0
      %520 = vadd.xlane.f32.xlu0 %v519
      %v521 = vpop.xlane.xlu0 %520
      %v522 = vld [vmem:[%s3] sm:$0x1f]
      %v524 = vlaneseq
      %v525 = vshrl.u32 %v524, 7
      %v526 = vsub.s32 0, %v525
      %v527 = vrot.slane %v522, %v526
      %529 = vbcast.lane.b32.xlu0 %v527, 256
      %v530 = vpop.permute.xlu0 %529
      %v531 = vlaneseq
      %v532 = vshrl.u32 %v531, 7
      %v533 = vsub.s32 1, %v532
      %v534 = vrot.slane %v522, %v533
      %536 = vbcast.lane.b32.xlu0 %v534, 256
      %v537 = vpop.permute.xlu0 %536
      %v538 = vlaneseq
      %v539 = vshrl.u32 %v538, 7
      %v540 = vsub.s32 2, %v539
      %v541 = vrot.slane %v522, %v540
      %543 = vbcast.lane.b32.xlu0 %v541, 256
      %v544 = vpop.permute.xlu0 %543
      %v545 = vlaneseq
      %v546 = vshrl.u32 %v545, 7
      %v547 = vsub.s32 3, %v546
      %v548 = vrot.slane %v522, %v547
      %550 = vbcast.lane.b32.xlu0 %v548, 256
      %v551 = vpop.permute.xlu0 %550
      %v552 = vlaneseq
      %v553 = vshrl.u32 %v552, 7
      %v554 = vsub.s32 4, %v553
      %v555 = vrot.slane %v522, %v554
      %557 = vbcast.lane.b32.xlu0 %v555, 256
      %v558 = vpop.permute.xlu0 %557
      %v564 = vadd.f32 %v509, %v530
      %v565 = vadd.f32 %v512, %v537
      %v566 = vadd.f32 %v515, %v544
      %v567 = vadd.f32 %v518, %v551
      %v568 = vadd.f32 %v521, %v558
      %v569 = vxor.u32 %v564, 2147483648
      %v570 = vxor.u32 %v565, 2147483648
      %v571 = vxor.u32 %v566, 2147483648
      %v572 = vxor.u32 %v567, 2147483648
      %v573 = vxor.u32 %v568, 2147483648
      %v574 = vmul.f32 %v569, 1.442695
      %v575 = vpow.pop %v574
      %v576 = vmul.f32 %v570, 1.442695
      %v577 = vpow.pop %v576
      %v578 = vmul.f32 %v571, 1.442695
      %v579 = vpow.pop %v578
      %v580 = vmul.f32 %v572, 1.442695
      %v581 = vpow.pop %v580
      %v582 = vmul.f32 %v573, 1.442695
      %v583 = vpow.pop %v582
      %v584 = vadd.f32 %v575, 1.0
      %v585 = vadd.f32 %v577, 1.0
      %v586 = vadd.f32 %v579, 1.0
      %v587 = vadd.f32 %v581, 1.0
      %v588 = vadd.f32 %v583, 1.0
      %v589 = vrcp.pop %v584
      %v590 = vmul.f32 1.0, %v589
      %v591 = vrcp.pop %v585
      %v592 = vmul.f32 1.0, %v591
      %v593 = vrcp.pop %v586
      %v594 = vmul.f32 1.0, %v593
      %v595 = vrcp.pop %v587
      %v596 = vmul.f32 1.0, %v595
      %v597 = vrcp.pop %v588
      %v598 = vmul.f32 1.0, %v597
      %v599 = vld [vmem:[%s4] sm:$0x1f]
      %605 = vset.pattern.permute.xlu0 0
      %606 = vperm.xlu0 %605, %v590
      %v607 = vpop.permute.xlu0 %606
      %608 = vset.pattern.permute.xlu0 0
      %609 = vperm.xlu0 %608, %v592
      %v610 = vpop.permute.xlu0 %609
      %611 = vset.pattern.permute.xlu0 0
      %612 = vperm.xlu0 %611, %v594
      %v613 = vpop.permute.xlu0 %612
      %614 = vset.pattern.permute.xlu0 0
      %615 = vperm.xlu0 %614, %v596
      %v616 = vpop.permute.xlu0 %615
      %617 = vset.pattern.permute.xlu0 0
      %618 = vperm.xlu0 %617, %v598
      %v619 = vpop.permute.xlu0 %618
      %v620 = vlaneseq
      %v621 = vand.u32 %v620, 127
      %v622 = vlaneseq
      %v623 = vshrl.u32 %v622, 7
      %v624 = vsub.s32 %v621, %v623
      %v625 = vrot.slane %v607, %v624
      %v626 = vlaneseq
      %v627 = vshrl.u32 %v626, 7
      %v628 = vsub.s32 %v621, %v627
      %v629 = vrot.slane %v610, %v628
      %v630 = vlaneseq
      %v631 = vshrl.u32 %v630, 7
      %v632 = vsub.s32 %v621, %v631
      %v633 = vrot.slane %v613, %v632
      %v634 = vlaneseq
      %v635 = vshrl.u32 %v634, 7
      %v636 = vsub.s32 %v621, %v635
      %v637 = vrot.slane %v616, %v636
      %v638 = vlaneseq
      %v639 = vshrl.u32 %v638, 7
      %v640 = vsub.s32 %v621, %v639
      %v641 = vrot.slane %v619, %v640
      %vm642 = vcmask 1041409
      %v643 = vsel %vm642, %v629, %v625
      %vm644 = vcmask 1042434
      %v645 = vsel %vm644, %v633, %v643
      %vm646 = vcmask 1043459
      %v647 = vsel %vm646, %v637, %v645
      %vm648 = vcmask 1044484
      %v649 = vsel %vm648, %v641, %v647
      %vm650 = vcmask 39936
      %v651 = vsel %vm650, %v649, 0
      %vm653 = vcmask 1044480
      %v655 = vsel %vm653, %v599, 0
      %657 = vmatprep.subr.mxu0 0.0
      %658 = vmatpush1.msra.mxu0 0.0
      %659 = vmatprep.subr.mxu0 0.0
      %660 = vmatpush1.msra.mxu0 0.0
      %661 = vmatprep.subr.mxu0 0.0
      %662 = vmatpush1.msra.mxu0 0.0
      %663 = vmatprep.subr.mxu0 0.0
      %664 = vmatpush1.msra.mxu0 0.0
      %665 = vmatprep.subr.mxu0 0.0
      %666 = vmatpush1.msra.mxu0 0.0
      %667 = vmatprep.subr.mxu0 0.0
      %668 = vmatpush1.msra.mxu0 0.0
      %669 = vmatprep.subr.mxu0 0.0
      %670 = vmatpush1.msra.mxu0 0.0
      %671 = vmatprep.subr.mxu0 0.0
      %672 = vmatpush1.msra.mxu0 0.0
      %673 = vmatprep.subr.mxu0 0.0
      %674 = vmatpush1.msra.mxu0 0.0
      %675 = vmatprep.subr.mxu0 0.0
      %676 = vmatpush1.msra.mxu0 0.0
      %677 = vmatprep.subr.mxu0 0.0
      %678 = vmatpush1.msra.mxu0 0.0
      %679 = vmatprep.subr.mxu0 0.0
      %680 = vmatpush1.msra.mxu0 0.0
      %681 = vmatprep.subr.mxu0 0.0
      %682 = vmatpush1.msra.mxu0 0.0
      %683 = vmatprep.subr.mxu0 0.0
      %684 = vmatpush1.msra.mxu0 0.0
      %685 = vmatprep.subr.mxu0 0.0
      %686 = vmatpush1.msra.mxu0 0.0
      %687 = vmatprep.subr.mxu0 0.0
      %688 = vmatpush1.msra.mxu0 %v655
      %689 = vmatprep.subr.mxu0 0.0
      %690 = vmatpush2.msra.mxu0 0.0
      %691 = vmatprep.subr.mxu0 0.0
      %692 = vmatpush2.msra.mxu0 0.0
      %693 = vmatprep.subr.mxu0 0.0
      %694 = vmatpush2.msra.mxu0 0.0
      %695 = vmatprep.subr.mxu0 0.0
      %696 = vmatpush2.msra.mxu0 0.0
      %697 = vmatprep.subr.mxu0 0.0
      %698 = vmatpush2.msra.mxu0 0.0
      %699 = vmatprep.subr.mxu0 0.0
      %700 = vmatpush2.msra.mxu0 0.0
      %701 = vmatprep.subr.mxu0 0.0
      %702 = vmatpush2.msra.mxu0 0.0
      %703 = vmatprep.subr.mxu0 0.0
      %704 = vmatpush2.msra.mxu0 0.0
      %705 = vmatprep.subr.mxu0 0.0
      %706 = vmatpush2.msra.mxu0 0.0
      %707 = vmatprep.subr.mxu0 0.0
      %708 = vmatpush2.msra.mxu0 0.0
      %709 = vmatprep.subr.mxu0 0.0
      %710 = vmatpush2.msra.mxu0 0.0
      %711 = vmatprep.subr.mxu0 0.0
      %712 = vmatpush2.msra.mxu0 0.0
      %713 = vmatprep.subr.mxu0 0.0
      %714 = vmatpush2.msra.mxu0 0.0
      %715 = vmatprep.subr.mxu0 0.0
      %716 = vmatpush2.msra.mxu0 0.0
      %717 = vmatprep.subr.mxu0 0.0
      %718 = vmatpush2.msra.mxu0 0.0
      %719 = vmatprep.subr.mxu0 0.0
      %720 = vmatpush2.msra.mxu0 0.0
      %721 = vmatprep.mubr.f32.mxu0 0.0
      %722 = vmatmul.mubr.f32.gmra.mxu0 %v651
      %v723 = vpop.f32.mrf.mxu0
      %v724 = vadd.f32 0.0, %v723
      %v725 = vpop.f32.mrf.mxu0
      %726 = vdwg.mxu0
      %vm727 = vcmask 36864
      %v728 = vsel %vm727, %v724, -inf
      %v729 = vrot.slane %v728, 4
      %v730 = vmax.f32 %v728, %v729
      %v731 = vrot.slane %v730, 2
      %v732 = vmax.f32 %v730, %v731
      %v733 = vrot.slane %v732, 1
      %v734 = vmax.f32 %v732, %v733
      %v735 = vsub.f32 %v724, %v734
      %v736 = vmul.f32 %v735, 1.442695
      %v737 = vpow.pop %v736
      %v738 = vsel %vm727, %v737, 0.0
      %v739 = vrot.slane %v738, 4
      %v740 = vadd.f32 %v738, %v739
      %v741 = vrot.slane %v740, 2
      %v742 = vadd.f32 %v740, %v741
      %v743 = vrot.slane %v742, 1
      %v744 = vadd.f32 %v742, %v743
      %v745 = vrcp.pop %v744
      %v746 = vmul.f32 %v737, %v745
      %747 = vst.msk [vmem:[%s222] sm:$0x1f] %vm727, %v746
      %p748 = scmp.lt.s32.totalorder %s16, 1
      %s749 = scalar_select %p748, %s16, 1
      %s750 = smul.addr %s749, 8
      %s751 = scalar_lea.vmem %s5, %s750
      // Predicated region
      $region41: #{tpu_custom_call.1} parent=39 // pred_check
        %p752 = pneg %p144
      $region42: #{tpu_custom_call.1} parent=39 // pred_check_branch
        %754 = sbr.rel (%p752) target = $region44
      $region43: #{tpu_custom_call.1} parent=39 // pred_region
        _
      $region44: #{tpu_custom_call.1} parent=39 // pred_fallthru
        _
    $region40: #{tpu_custom_call.1} parent=5 // pred_fallthru
      _
    %p755 = scmp.le.s32.totalorder 2, %s11
    // Predicated region
    $region45: #{tpu_custom_call.1} parent=5 // pred_check
      %p756 = pneg %p755
    $region46: #{tpu_custom_call.1} parent=5 // pred_check_branch
      %758 = sbr.rel (%p756) target = $region48
    $region47: #{tpu_custom_call.1} parent=5 // pred_region
      %s759 = ssub.s32 %s11, 2
      // Predicated region
      $region49: #{tpu_custom_call.1} parent=47 // pred_check
        %p760 = pneg %p150
      $region50: #{tpu_custom_call.1} parent=47 // pred_check_branch
        %762 = sbr.rel (%p760) target = $region52
      $region51: #{tpu_custom_call.1} parent=47 // pred_region
        %p763 = scmp.lt.s32.totalorder %s17, 1
        %s764 = scalar_select %p763, %s17, 1
        %s765 = smul.addr %s764, 8
        %s766 = scalar_lea.vmem %s5, %s765
      $region52: #{tpu_custom_call.1} parent=47 // pred_fallthru
        _
    $region48: #{tpu_custom_call.1} parent=5 // pred_fallthru
      _
  $region6: #{tpu_custom_call.1} parent=0 // loop_footer
    %s15 = sadd.s32 1, %s11
  $region7: #{tpu_custom_call.1} parent=0 // loop_footer_branch
    %10 = sbr.rel target = $region3
  $region8: #{tpu_custom_call.1} parent=0 // loop_exit
    _

</llo_original>
